<compile_context>
chip_gen: v6e
topology: v6e:2x2x1
jax: 0.10.0
libtpu: 0.0.40
codegen_flags: <defaults>
</compile_context>

<pallas_src>
import jax
import jax.numpy as jnp
from jax.experimental import pallas as pl
from jax.experimental.pallas import tpu as pltpu

HIDDEN = 256
BN_EPS = 1e-5
NEG_SLOPE = 0.2
LANE = 128


def _bn_lrelu(x, gamma, beta):
    """Training-mode BatchNorm1d (biased batch variance) fused into one
    scale/shift FMA per element, followed by LeakyReLU(0.2).  All f32."""
    mean = jnp.mean(x, axis=0, keepdims=True)
    var = jnp.mean(jnp.square(x - mean), axis=0, keepdims=True)
    scale = gamma * jax.lax.rsqrt(var + BN_EPS)      # rsqrt -> EUP slot (cheap)
    shift = beta - mean * scale
    y = x * scale + shift                            # single multiply-add
    return jnp.where(y > 0, y, NEG_SLOPE * y)


def classifier_kernel(z_ref, w1_ref, w2_ref, w3_ref, vec_ref, out_ref):
    # vec_ref: [8, HIDDEN] f32, packed small vectors:
    #   row 0: b1, 1: g1, 2: be1, 3: b2, 4: g2, 5: be2,
    #   row 6: b3 padded to the padded output width, row 7: zeros (pad).
    vecs = vec_ref[...]
    b1, g1, be1 = vecs[0:1, :], vecs[1:2, :], vecs[2:3, :]
    b2, g2, be2 = vecs[3:4, :], vecs[4:5, :], vecs[5:6, :]
    n_out = out_ref.shape[1]                         # static (padded to 128)
    b3 = vecs[6:7, :n_out]

    z = z_ref[...].astype(jnp.bfloat16)              # bf16 MXU operand

    # fc_1 -> bn -> leaky_relu   (f32 accumulation + f32 epilogue)
    h = jnp.dot(z, w1_ref[...], preferred_element_type=jnp.float32) + b1
    h = _bn_lrelu(h, g1, be1)

    # fc_2 -> bn -> leaky_relu
    h = jnp.dot(h.astype(jnp.bfloat16), w2_ref[...],
                preferred_element_type=jnp.float32) + b2
    h = _bn_lrelu(h, g2, be2)

    # fc_3 (output padded to lane-dense width; padded columns are exact zeros)
    logits = jnp.dot(h.astype(jnp.bfloat16), w3_ref[...],
                     preferred_element_type=jnp.float32) + b3
    out_ref[...] = logits                            # unmasked lane-dense store


def classifier_forward(z, params):
    B = z.shape[0]
    num_classes = params["num_classes"]
    n_pad = params["w3_pad"].shape[1]

    args = (z, params["w1"], params["w2"], params["w3_pad"], params["vecs"])
    vmem = pl.BlockSpec(memory_space=pltpu.MemorySpace.VMEM)
    out_pad = pl.pallas_call(
        classifier_kernel,
        out_shape=jax.ShapeDtypeStruct((B, n_pad), jnp.float32),
        in_specs=[vmem] * len(args),
        out_specs=vmem,
    )(*args)
    return out_pad[:, :num_classes]


def init_params(key, z_dim, num_classes):
    """PyTorch nn.Linear default init (U[-1/sqrt(fan_in), +]).  Weights as bf16
    (MXU operands); biases / BN affine kept f32."""
    def linear(key, fan_in, fan_out):
        kw, kb = jax.random.split(key)
        bound = 1.0 / jnp.sqrt(fan_in)
        w = jax.random.uniform(kw, (fan_in, fan_out), jnp.float32, -bound, bound)
        b = jax.random.uniform(kb, (1, fan_out), jnp.float32, -bound, bound)
        return w, b

    k1, k2, k3 = jax.random.split(key, 3)
    w1, b1 = linear(k1, z_dim, HIDDEN)
    w2, b2 = linear(k2, HIDDEN, HIDDEN)
    w3, b3 = linear(k3, HIDDEN, num_classes)
    ones = jnp.ones((1, HIDDEN), jnp.float32)
    zeros = jnp.zeros((1, HIDDEN), jnp.float32)
    return {
        "w1": w1.astype(jnp.bfloat16), "b1": b1, "g1": ones, "be1": zeros,
        "w2": w2.astype(jnp.bfloat16), "b2": b2, "g2": ones, "be2": zeros,
        "w3": w3.astype(jnp.bfloat16), "b3": b3,
    }


def pack_params(p, num_classes):
    """Pad w3/b3 to a lane-dense output width and pack the 7 small vectors into
    one [8, HIDDEN] f32 array (single DMA instead of seven)."""
    n_pad = max(LANE, pl.cdiv(num_classes, LANE) * LANE)
    assert n_pad <= HIDDEN, "packing scheme assumes padded num_classes <= HIDDEN"
    w3_pad = jnp.zeros((HIDDEN, n_pad), jnp.bfloat16).at[:, :num_classes].set(p["w3"])
    b3_row = jnp.zeros((1, HIDDEN), jnp.float32).at[:, :num_classes].set(p["b3"])
    vecs = jnp.concatenate(
        [p["b1"], p["g1"], p["be1"], p["b2"], p["g2"], p["be2"], b3_row,
         jnp.zeros((1, HIDDEN), jnp.float32)], axis=0)          # [8, HIDDEN]
    return {"w1": p["w1"], "w2": p["w2"], "w3_pad": w3_pad, "vecs": vecs,
            "num_classes": num_classes}


def classifier_ref(z, p):
    """Pure-JAX reference mirroring the kernel's mixed precision
    (bf16 matmul operands, f32 accumulation, f32 BN/LeakyReLU epilogue)."""
    def bn(x, g, b):
        m = jnp.mean(x, axis=0, keepdims=True)
        v = jnp.mean(jnp.square(x - m), axis=0, keepdims=True)
        return (x - m) * jax.lax.rsqrt(v + BN_EPS) * g + b

    def lrelu(x):
        return jnp.where(x > 0, x, NEG_SLOPE * x)

    h = jnp.dot(z.astype(jnp.bfloat16), p["w1"],
                preferred_element_type=jnp.float32) + p["b1"]
    h = lrelu(bn(h, p["g1"], p["be1"]))
    h = jnp.dot(h.astype(jnp.bfloat16), p["w2"],
                preferred_element_type=jnp.float32) + p["b2"]
    h = lrelu(bn(h, p["g2"], p["be2"]))
    return jnp.dot(h.astype(jnp.bfloat16), p["w3"],
                   preferred_element_type=jnp.float32) + p["b3"]


if __name__ == "__main__":
    B, Z_DIM, NUM_CLASSES = 8, 32, 10

    key = jax.random.PRNGKey(0)
    k_x, k_p = jax.random.split(key)
    z = jax.random.normal(k_x, (B, Z_DIM), jnp.float32)

    raw_params = init_params(k_p, Z_DIM, NUM_CLASSES)
    params = pack_params(raw_params, NUM_CLASSES)

    out = classifier_forward(z, params)
    out = jax.block_until_ready(out)

    ref = classifier_ref(z, raw_params)
    assert out.shape == (B, NUM_CLASSES)
    # bf16 operands + different accumulation order vs XLA dot -> small tolerance
    assert jnp.allclose(out, ref, atol=2e-2, rtol=2e-2), "mismatch vs JAX reference"

    # TODO(synk): BatchNorm1d running_mean/var bookkeeping (training-mode state
    # updates) is not modeled; only the forward activation is reproduced.
    print("KERNEL_OK")
</pallas_src>

<mosaic_0001>
module attributes {stable_mosaic.version = 11 : i64} {
  func.func @classifier_kernel(%arg0: memref<8x32xf32, #tpu.memory_space<vmem>>, %arg1: memref<32x256xbf16, #tpu.memory_space<vmem>>, %arg2: memref<256x256xbf16, #tpu.memory_space<vmem>>, %arg3: memref<256x128xbf16, #tpu.memory_space<vmem>>, %arg4: memref<8x256xf32, #tpu.memory_space<vmem>>, %arg5: memref<8x128xf32, #tpu.memory_space<vmem>>) attributes {dimension_semantics = [], scalar_prefetch = 0 : i64, scratch_operands = 0 : i64, tpu.core_type = #tpu.core_type<tc>} {
    %c0 = arith.constant 0 : index
    %c0_0 = arith.constant 0 : index
    %0 = vector.load %arg4[%c0, %c0_0] : memref<8x256xf32, #tpu.memory_space<vmem>>, vector<8x256xf32>
    %1 = vector.extract_strided_slice %0 {offsets = [0, 0], sizes = [1, 256], strides = [1, 1]} : vector<8x256xf32> to vector<1x256xf32>
    %2 = vector.extract_strided_slice %0 {offsets = [1, 0], sizes = [1, 256], strides = [1, 1]} : vector<8x256xf32> to vector<1x256xf32>
    %3 = vector.extract_strided_slice %0 {offsets = [2, 0], sizes = [1, 256], strides = [1, 1]} : vector<8x256xf32> to vector<1x256xf32>
    %4 = vector.extract_strided_slice %0 {offsets = [3, 0], sizes = [1, 256], strides = [1, 1]} : vector<8x256xf32> to vector<1x256xf32>
    %5 = vector.extract_strided_slice %0 {offsets = [4, 0], sizes = [1, 256], strides = [1, 1]} : vector<8x256xf32> to vector<1x256xf32>
    %6 = vector.extract_strided_slice %0 {offsets = [5, 0], sizes = [1, 256], strides = [1, 1]} : vector<8x256xf32> to vector<1x256xf32>
    %7 = vector.extract_strided_slice %0 {offsets = [6, 0], sizes = [1, 128], strides = [1, 1]} : vector<8x256xf32> to vector<1x128xf32>
    %c0_1 = arith.constant 0 : index
    %c0_2 = arith.constant 0 : index
    %8 = vector.load %arg0[%c0_1, %c0_2] : memref<8x32xf32, #tpu.memory_space<vmem>>, vector<8x32xf32>
    %9 = arith.truncf %8 : vector<8x32xf32> to vector<8x32xbf16>
    %c0_3 = arith.constant 0 : index
    %c0_4 = arith.constant 0 : index
    %10 = vector.load %arg1[%c0_3, %c0_4] : memref<32x256xbf16, #tpu.memory_space<vmem>>, vector<32x256xbf16>
    %cst = arith.constant dense<0.000000e+00> : vector<8x256xf32>
    %11 = tpu.matmul %9, %10, %cst {dimension_numbers = #tpu.dot_dimension_numbers<[1], [0], [0], [1], [0, 0, 1, 1], [], []>} : vector<8x32xbf16>, vector<32x256xbf16>, vector<8x256xf32> -> vector<8x256xf32>
    %12 = vector.broadcast %1 : vector<1x256xf32> to vector<8x256xf32>
    %13 = arith.addf %11, %12 : vector<8x256xf32>
    %cst_5 = arith.constant dense<0.000000e+00> : vector<256xf32>
    %14 = vector.multi_reduction <add>, %13, %cst_5 [0] : vector<8x256xf32> to vector<256xf32>
    %15 = vector.shape_cast %14 : vector<256xf32> to vector<1x256xf32>
    %cst_6 = arith.constant 8.000000e+00 : f32
    %16 = vector.broadcast %cst_6 : f32 to vector<1x256xf32>
    %17 = arith.divf %15, %16 : vector<1x256xf32>
    %18 = vector.broadcast %17 : vector<1x256xf32> to vector<8x256xf32>
    %19 = arith.subf %13, %18 : vector<8x256xf32>
    %20 = arith.mulf %19, %19 : vector<8x256xf32>
    %cst_7 = arith.constant dense<0.000000e+00> : vector<256xf32>
    %21 = vector.multi_reduction <add>, %20, %cst_7 [0] : vector<8x256xf32> to vector<256xf32>
    %22 = vector.shape_cast %21 : vector<256xf32> to vector<1x256xf32>
    %cst_8 = arith.constant 8.000000e+00 : f32
    %23 = vector.broadcast %cst_8 : f32 to vector<1x256xf32>
    %24 = arith.divf %22, %23 : vector<1x256xf32>
    %cst_9 = arith.constant 9.99999974E-6 : f32
    %25 = vector.broadcast %cst_9 : f32 to vector<1x256xf32>
    %26 = arith.addf %24, %25 : vector<1x256xf32>
    %27 = math.rsqrt %26 : vector<1x256xf32>
    %28 = arith.mulf %2, %27 : vector<1x256xf32>
    %29 = arith.mulf %17, %28 : vector<1x256xf32>
    %30 = arith.subf %3, %29 : vector<1x256xf32>
    %31 = vector.broadcast %28 : vector<1x256xf32> to vector<8x256xf32>
    %32 = arith.mulf %13, %31 : vector<8x256xf32>
    %33 = vector.broadcast %30 : vector<1x256xf32> to vector<8x256xf32>
    %34 = arith.addf %32, %33 : vector<8x256xf32>
    %cst_10 = arith.constant 0.000000e+00 : f32
    %35 = vector.broadcast %cst_10 : f32 to vector<8x256xf32>
    %36 = arith.cmpf ogt, %34, %35 : vector<8x256xf32>
    %cst_11 = arith.constant 2.000000e-01 : f32
    %37 = vector.broadcast %cst_11 : f32 to vector<8x256xf32>
    %38 = arith.mulf %37, %34 : vector<8x256xf32>
    %39 = arith.select %36, %34, %38 : vector<8x256xi1>, vector<8x256xf32>
    %40 = arith.truncf %39 : vector<8x256xf32> to vector<8x256xbf16>
    %c0_12 = arith.constant 0 : index
    %c0_13 = arith.constant 0 : index
    %41 = vector.load %arg2[%c0_12, %c0_13] : memref<256x256xbf16, #tpu.memory_space<vmem>>, vector<256x256xbf16>
    %cst_14 = arith.constant dense<0.000000e+00> : vector<8x256xf32>
    %42 = tpu.matmul %40, %41, %cst_14 {dimension_numbers = #tpu.dot_dimension_numbers<[1], [0], [0], [1], [0, 0, 1, 1], [], []>} : vector<8x256xbf16>, vector<256x256xbf16>, vector<8x256xf32> -> vector<8x256xf32>
    %43 = vector.broadcast %4 : vector<1x256xf32> to vector<8x256xf32>
    %44 = arith.addf %42, %43 : vector<8x256xf32>
    %cst_15 = arith.constant dense<0.000000e+00> : vector<256xf32>
    %45 = vector.multi_reduction <add>, %44, %cst_15 [0] : vector<8x256xf32> to vector<256xf32>
    %46 = vector.shape_cast %45 : vector<256xf32> to vector<1x256xf32>
    %cst_16 = arith.constant 8.000000e+00 : f32
    %47 = vector.broadcast %cst_16 : f32 to vector<1x256xf32>
    %48 = arith.divf %46, %47 : vector<1x256xf32>
    %49 = vector.broadcast %48 : vector<1x256xf32> to vector<8x256xf32>
    %50 = arith.subf %44, %49 : vector<8x256xf32>
    %51 = arith.mulf %50, %50 : vector<8x256xf32>
    %cst_17 = arith.constant dense<0.000000e+00> : vector<256xf32>
    %52 = vector.multi_reduction <add>, %51, %cst_17 [0] : vector<8x256xf32> to vector<256xf32>
    %53 = vector.shape_cast %52 : vector<256xf32> to vector<1x256xf32>
    %cst_18 = arith.constant 8.000000e+00 : f32
    %54 = vector.broadcast %cst_18 : f32 to vector<1x256xf32>
    %55 = arith.divf %53, %54 : vector<1x256xf32>
    %cst_19 = arith.constant 9.99999974E-6 : f32
    %56 = vector.broadcast %cst_19 : f32 to vector<1x256xf32>
    %57 = arith.addf %55, %56 : vector<1x256xf32>
    %58 = math.rsqrt %57 : vector<1x256xf32>
    %59 = arith.mulf %5, %58 : vector<1x256xf32>
    %60 = arith.mulf %48, %59 : vector<1x256xf32>
    %61 = arith.subf %6, %60 : vector<1x256xf32>
    %62 = vector.broadcast %59 : vector<1x256xf32> to vector<8x256xf32>
    %63 = arith.mulf %44, %62 : vector<8x256xf32>
    %64 = vector.broadcast %61 : vector<1x256xf32> to vector<8x256xf32>
    %65 = arith.addf %63, %64 : vector<8x256xf32>
    %cst_20 = arith.constant 0.000000e+00 : f32
    %66 = vector.broadcast %cst_20 : f32 to vector<8x256xf32>
    %67 = arith.cmpf ogt, %65, %66 : vector<8x256xf32>
    %cst_21 = arith.constant 2.000000e-01 : f32
    %68 = vector.broadcast %cst_21 : f32 to vector<8x256xf32>
    %69 = arith.mulf %68, %65 : vector<8x256xf32>
    %70 = arith.select %67, %65, %69 : vector<8x256xi1>, vector<8x256xf32>
    %71 = arith.truncf %70 : vector<8x256xf32> to vector<8x256xbf16>
    %c0_22 = arith.constant 0 : index
    %c0_23 = arith.constant 0 : index
    %72 = vector.load %arg3[%c0_22, %c0_23] : memref<256x128xbf16, #tpu.memory_space<vmem>>, vector<256x128xbf16>
    %cst_24 = arith.constant dense<0.000000e+00> : vector<8x128xf32>
    %73 = tpu.matmul %71, %72, %cst_24 {dimension_numbers = #tpu.dot_dimension_numbers<[1], [0], [0], [1], [0, 0, 1, 1], [], []>} : vector<8x256xbf16>, vector<256x128xbf16>, vector<8x128xf32> -> vector<8x128xf32>
    %74 = vector.broadcast %7 : vector<1x128xf32> to vector<8x128xf32>
    %75 = arith.addf %73, %74 : vector<8x128xf32>
    %c0_25 = arith.constant 0 : index
    %c0_26 = arith.constant 0 : index
    %76 = vector.load %arg5[%c0_25, %c0_26] : memref<8x128xf32, #tpu.memory_space<vmem>>, vector<8x128xf32>
    tpu.vector_store %arg5[%c0_25, %c0_26], %75 {strides = array<i32>} : memref<8x128xf32, #tpu.memory_space<vmem>>, vector<8x128xf32>,
    return
  }
}

</mosaic_0001>

<llo_original>
// kernel: tpu_custom_call.1
$region0: #{tpu_custom_call.1}
  #allocation0 [shape = 'u32[]', space=smem, size = 0x4, offset = 0x4, fixed_abs, tag = 'smem constant byte address 0x4 - core index']
  #allocation1 [shape = 'u32[144,128]{1,0:T(1,128)}', space=vmem, size = 0x12000, scoped, tag = 'internal scratch']
  %s0 = inlined_call_operand.hbm [shape: f32[8,32], index: 0, kind: input, shape index: {}]
  %s1 = inlined_call_operand.hbm [shape: bf16[32,256], index: 1, kind: input, shape index: {}]
  %s2 = inlined_call_operand.hbm [shape: bf16[256,256], index: 2, kind: input, shape index: {}]
  %s3 = inlined_call_operand.hbm [shape: bf16[256,128], index: 3, kind: input, shape index: {}]
  %s4 = inlined_call_operand.hbm [shape: f32[8,256], index: 4, kind: input, shape index: {}]
  %s5 = inlined_call_operand.hbm [shape: f32[8,128], index: 5, kind: output, shape index: {}]
  %s6 = sld [smem:[#allocation0]]
  $region50: #{tpu_custom_call.1} parent=0
    _
  %s8 = ssub.s32 1, %s6
  %s9 = scalar_select 0, %s8, %s6
  $region1: #{tpu_custom_call.1} parent=0
    #allocation2 [shape = 'u8[4096]{0}', space=vmem, size = 0x1000, scoped, tag = 'input window, operand 0, single buffered']
    #allocation3 [shape = 's32[1]{0}', space=sflag, size = 0x4, scoped, tag = 'scoped memory for tpu_custom_call.1']
    #allocation4 [shape = 's32[1]{0}', space=sflag, size = 0x4, scoped, tag = 'scoped memory for tpu_custom_call.1']
    #allocation5 [shape = 'u8[16384]{0}', space=vmem, size = 0x4000, scoped, tag = 'input window, operand 1, single buffered']
    #allocation6 [shape = 's32[1]{0}', space=sflag, size = 0x4, scoped, tag = 'scoped memory for tpu_custom_call.1']
    #allocation7 [shape = 'u8[131072]{0}', space=vmem, size = 0x20000, scoped, tag = 'input window, operand 2, single buffered']
    #allocation8 [shape = 'u8[65536]{0}', space=vmem, size = 0x10000, scoped, tag = 'input window, operand 3, single buffered']
    #allocation9 [shape = 's32[1]{0}', space=sflag, size = 0x4, scoped, tag = 'scoped memory for tpu_custom_call.1']
    #allocation10 [shape = 'u8[8192]{0}', space=vmem, size = 0x2000, scoped, tag = 'input window, operand 4, single buffered']
    #allocation11 [shape = 'u8[4096]{0}', space=vmem, size = 0x1000, scoped, tag = 'output window, operand 0, single buffered']
    %10 = vsyncpa [#allocation3], 0
    %11 = vsyncpa [#allocation6], 0
    %12 = vsyncpa [#allocation9], 0
    %13 = vsyncpa [#allocation4], 0
    // Predicated region
    $region2: #{tpu_custom_call.1} parent=1 // pred_check
      _
    $region3: #{tpu_custom_call.1} parent=1 // pred_check_branch
      %15 = sbr.rel (0) target = $region5
    $region4: #{tpu_custom_call.1} parent=1 // pred_region
      %s17 = ssub.s32 128, 128
      %18 = vsyncadd [#allocation3], %s17
      %s20 = sshll.u32 [#allocation2], 4
      %s21 = int_to_ptr.vmem [resolvable:$true] %s20
      %23 = dma.hbm_to_vmem [thread:$0]  %s0, 128, %s21, [#allocation3]
    $region5: #{tpu_custom_call.1} parent=1 // pred_fallthru
      _
    // Predicated region
    $region6: #{tpu_custom_call.1} parent=1 // pred_check
      _
    $region7: #{tpu_custom_call.1} parent=1 // pred_check_branch
      %25 = sbr.rel (0) target = $region9
    $region8: #{tpu_custom_call.1} parent=1 // pred_region
      %s27 = ssub.s32 512, 512
      %28 = vsyncadd [#allocation6], %s27
      %s29 = sshll.u32 [#allocation5], 4
      %s30 = int_to_ptr.vmem [resolvable:$true] %s29
      %35 = dma.hbm_to_vmem [thread:$0]  %s1, 512, %s30, [#allocation6], 128, 128, 8
    $region9: #{tpu_custom_call.1} parent=1 // pred_fallthru
      _
    // Predicated region
    $region10: #{tpu_custom_call.1} parent=1 // pred_check
      _
    $region11: #{tpu_custom_call.1} parent=1 // pred_check_branch
      %37 = sbr.rel (0) target = $region13
    $region12: #{tpu_custom_call.1} parent=1 // pred_region
      %s39 = ssub.s32 4096, 4096
      %40 = vsyncadd [#allocation6], %s39
      %s41 = sshll.u32 [#allocation7], 4
      %s42 = int_to_ptr.vmem [resolvable:$true] %s41
      %47 = dma.hbm_to_vmem [thread:$0]  %s2, 4096, %s42, [#allocation6], 128, 128, 8
    $region13: #{tpu_custom_call.1} parent=1 // pred_fallthru
      _
    // Predicated region
    $region14: #{tpu_custom_call.1} parent=1 // pred_check
      _
    $region15: #{tpu_custom_call.1} parent=1 // pred_check_branch
      %49 = sbr.rel (0) target = $region17
    $region16: #{tpu_custom_call.1} parent=1 // pred_region
      %s51 = ssub.s32 2048, 2048
      %52 = vsyncadd [#allocation9], %s51
      %s53 = sshll.u32 [#allocation8], 4
      %s54 = int_to_ptr.vmem [resolvable:$true] %s53
      %59 = dma.hbm_to_vmem [thread:$0]  %s3, 2048, %s54, [#allocation9], 64, 64, 4
    $region17: #{tpu_custom_call.1} parent=1 // pred_fallthru
      _
    // Predicated region
    $region18: #{tpu_custom_call.1} parent=1 // pred_check
      _
    $region19: #{tpu_custom_call.1} parent=1 // pred_check_branch
      %61 = sbr.rel (0) target = $region21
    $region20: #{tpu_custom_call.1} parent=1 // pred_region
      %s63 = ssub.s32 256, 256
      %64 = vsyncadd [#allocation9], %s63
      %s66 = sshll.u32 [#allocation10], 4
      %s67 = int_to_ptr.vmem [resolvable:$true] %s66
      %69 = dma.hbm_to_vmem [thread:$0]  %s4, 256, %s67, [#allocation9]
    $region21: #{tpu_custom_call.1} parent=1 // pred_fallthru
      _
    // Predicated region
    $region22: #{tpu_custom_call.1} parent=1 // pred_check
      _
    $region23: #{tpu_custom_call.1} parent=1 // pred_check_branch
      %71 = sbr.rel (0) target = $region25
    $region24: #{tpu_custom_call.1} parent=1 // pred_region
      %72 = dma.done [#allocation3], 128
    $region25: #{tpu_custom_call.1} parent=1 // pred_fallthru
      _
    // Predicated region
    $region26: #{tpu_custom_call.1} parent=1 // pred_check
      _
    $region27: #{tpu_custom_call.1} parent=1 // pred_check_branch
      %74 = sbr.rel (0) target = $region29
    $region28: #{tpu_custom_call.1} parent=1 // pred_region
      %75 = dma.done [#allocation6], 512
    $region29: #{tpu_custom_call.1} parent=1 // pred_fallthru
      _
    // Predicated region
    $region30: #{tpu_custom_call.1} parent=1 // pred_check
      _
    $region31: #{tpu_custom_call.1} parent=1 // pred_check_branch
      %77 = sbr.rel (0) target = $region33
    $region32: #{tpu_custom_call.1} parent=1 // pred_region
      %78 = dma.done [#allocation6], 4096
    $region33: #{tpu_custom_call.1} parent=1 // pred_fallthru
      _
    // Predicated region
    $region34: #{tpu_custom_call.1} parent=1 // pred_check
      _
    $region35: #{tpu_custom_call.1} parent=1 // pred_check_branch
      %80 = sbr.rel (0) target = $region37
    $region36: #{tpu_custom_call.1} parent=1 // pred_region
      %81 = dma.done [#allocation9], 2048
    $region37: #{tpu_custom_call.1} parent=1 // pred_fallthru
      _
    // Predicated region
    $region38: #{tpu_custom_call.1} parent=1 // pred_check
      _
    $region39: #{tpu_custom_call.1} parent=1 // pred_check_branch
      %83 = sbr.rel (0) target = $region41
    $region40: #{tpu_custom_call.1} parent=1 // pred_region
      %84 = dma.done [#allocation9], 256
    $region41: #{tpu_custom_call.1} parent=1 // pred_fallthru
      _
    %v86 = vld [vmem:[#allocation10] sm:$0xff]
    %v87 = vld [vmem:[#allocation10 + $0x8] sm:$0xff]
    %v88 = vld [vmem:[#allocation2] sm:$0xff]
    %v89 = vpack.c.bf16 %v88, %v88
    %v90 = vld [vmem:[#allocation5] sm:$0xff]
    %v91 = vld [vmem:[#allocation5 + $0x8] sm:$0xff]
    %v92 = vld [vmem:[#allocation5 + $0x10] sm:$0xff]
    %v93 = vld [vmem:[#allocation5 + $0x18] sm:$0xff]
    %v94 = vlaneseq
    %v95 = vshrl.u32 %v94, 7
    %v96 = vsub.s32 0, %v95
    %v97 = vrot.slane %v86, %v96
    %v98 = vlaneseq
    %v99 = vshrl.u32 %v98, 7
    %v100 = vsub.s32 0, %v99
    %v101 = vrot.slane %v87, %v100
    %v106 = vunpack.c.l.b16 %v90
    %v107 = vunpack.c.h.b16 %v90
    %v108 = vunpack.c.l.b16 %v91
    %v109 = vunpack.c.h.b16 %v91
    %v110 = vunpack.c.l.b16 %v92
    %v111 = vunpack.c.h.b16 %v92
    %v112 = vunpack.c.l.b16 %v93
    %v113 = vunpack.c.h.b16 %v93
    %v114 = vpack.c.b16 %v108, %v106
    %v115 = vpack.c.b16 %v109, %v107
    %v116 = vpack.c.b16 %v112, %v110
    %v117 = vpack.c.b16 %v113, %v111
    %vm122 = vcmask 261120
    %v124 = vsel %vm122, %v89, 0
    %126 = vmatprep.subr.bf16.mxu0 0
    %127 = vmatpush1.bf16.msra.mxu0 0
    %128 = vmatprep.subr.bf16.mxu0 0
    %129 = vmatpush1.bf16.msra.mxu0 0
    %130 = vmatprep.subr.bf16.mxu0 0
    %131 = vmatpush1.bf16.msra.mxu0 0
    %132 = vmatprep.subr.bf16.mxu0 0
    %133 = vmatpush1.bf16.msra.mxu0 0
    %134 = vmatprep.subr.bf16.mxu0 0
    %135 = vmatpush1.bf16.msra.mxu0 0
    %136 = vmatprep.subr.bf16.mxu0 0
    %137 = vmatpush1.bf16.msra.mxu0 0
    %138 = vmatprep.subr.bf16.mxu0 %v117
    %139 = vmatpush1.bf16.msra.mxu0 %v116
    %140 = vmatprep.subr.bf16.mxu0 %v115
    %141 = vmatpush1.bf16.msra.mxu0 %v114
    %142 = vmatprep.subr.bf16.mxu0 0
    %143 = vmatpush2.bf16.msra.mxu0 0
    %144 = vmatprep.subr.bf16.mxu0 0
    %145 = vmatpush2.bf16.msra.mxu0 0
    %146 = vmatprep.subr.bf16.mxu0 0
    %147 = vmatpush2.bf16.msra.mxu0 0
    %148 = vmatprep.subr.bf16.mxu0 0
    %149 = vmatpush2.bf16.msra.mxu0 0
    %150 = vmatprep.subr.bf16.mxu0 0
    %151 = vmatpush2.bf16.msra.mxu0 0
    %152 = vmatprep.subr.bf16.mxu0 0
    %153 = vmatpush2.bf16.msra.mxu0 0
    %154 = vmatprep.subr.bf16.mxu0 0
    %155 = vmatpush2.bf16.msra.mxu0 0
    %156 = vmatprep.subr.bf16.mxu0 0
    %157 = vmatpush2.bf16.msra.mxu0 0
    %158 = vmatprep.mubr.bf16.mxu0 0
    %159 = vmatmul.mubr.bf16.gmra.mxu0 %v124
    %v160 = vpop.f32.mrf.mxu0
    %v161 = vadd.f32 %v97, %v160
    %v162 = vpop.f32.mrf.mxu0
    %v163 = vadd.f32 %v101, %v162
    %v164 = vpop.f32.mrf.mxu0
    %v165 = vpop.f32.mrf.mxu0
    %166 = vdwg.mxu0
    %v167 = vrot.slane %v161, 4
    %v168 = vadd.f32 %v161, %v167
    %v169 = vrot.slane %v168, 2
    %v170 = vadd.f32 %v168, %v169
    %v171 = vrot.slane %v170, 1
    %v172 = vadd.f32 %v170, %v171
    %v173 = vrot.slane %v163, 4
    %v174 = vadd.f32 %v163, %v173
    %v175 = vrot.slane %v174, 2
    %v176 = vadd.f32 %v174, %v175
    %v177 = vrot.slane %v176, 1
    %v178 = vadd.f32 %v176, %v177
    %v179 = vrcp.pop 8.0
    %v180 = vmul.f32 %v172, %v179
    %v181 = vmul.f32 %v178, %v179
    %v182 = vsub.f32 %v161, %v180
    %v183 = vsub.f32 %v163, %v181
    %v184 = vmul.f32 %v182, %v182
    %v185 = vmul.f32 %v183, %v183
    %v186 = vrot.slane %v184, 4
    %v187 = vadd.f32 %v184, %v186
    %v188 = vrot.slane %v187, 2
    %v189 = vadd.f32 %v187, %v188
    %v190 = vrot.slane %v189, 1
    %v191 = vadd.f32 %v189, %v190
    %v192 = vrot.slane %v185, 4
    %v193 = vadd.f32 %v185, %v192
    %v194 = vrot.slane %v193, 2
    %v195 = vadd.f32 %v193, %v194
    %v196 = vrot.slane %v195, 1
    %v197 = vadd.f32 %v195, %v196
    %v198 = vmul.f32 %v191, %v179
    %v199 = vmul.f32 %v197, %v179
    %v200 = vadd.f32 %v198, 1e-05
    %v201 = vadd.f32 %v199, 1e-05
    %v202 = vrsqrt.pop %v200
    %v203 = vrsqrt.pop %v201
    %v204 = vmul.f32 %v86, %v202
    %v205 = vmul.f32 %v87, %v203
    %v206 = vmul.f32 %v180, %v204
    %v207 = vmul.f32 %v181, %v205
    %v210 = vrot.slane %v206, 7
    %v211 = vrot.slane %v207, 7
    %v214 = vsub.f32 %v86, %v210
    %v215 = vsub.f32 %v87, %v211
    %v216 = vlaneseq
    %v217 = vshrl.u32 %v216, 7
    %v218 = vsub.s32 1, %v217
    %v219 = vrot.slane %v204, %v218
    %v220 = vlaneseq
    %v221 = vshrl.u32 %v220, 7
    %v222 = vsub.s32 1, %v221
    %v223 = vrot.slane %v205, %v222
    %v224 = vmul.f32 %v161, %v219
    %v225 = vmul.f32 %v163, %v223
    %v226 = vlaneseq
    %v227 = vshrl.u32 %v226, 7
    %v228 = vsub.s32 2, %v227
    %v229 = vrot.slane %v214, %v228
    %v230 = vlaneseq
    %v231 = vshrl.u32 %v230, 7
    %v232 = vsub.s32 2, %v231
    %v233 = vrot.slane %v215, %v232
    %v234 = vadd.f32 %v224, %v229
    %v235 = vadd.f32 %v225, %v233
    %vm236 = vcmp.gt.f32.partialorder %v234, 0.0
    %vm237 = vcmp.gt.f32.partialorder %v235, 0.0
    %v238 = vmul.f32 %v234, 0.2
    %v239 = vmul.f32 %v235, 0.2
    %v240 = vsel %vm236, %v234, %v238
    %v241 = vsel %vm237, %v235, %v239
    %v242 = vpack.c.bf16 %v240, %v240
    %v243 = vpack.c.bf16 %v241, %v241
    %v244 = vld [vmem:[#allocation7] sm:$0xff]
    %v245 = vld [vmem:[#allocation7 + $0x8] sm:$0xff]
    %v246 = vld [vmem:[#allocation7 + $0x10] sm:$0xff]
    %v247 = vld [vmem:[#allocation7 + $0x18] sm:$0xff]
    %v248 = vld [vmem:[#allocation7 + $0x20] sm:$0xff]
    %v249 = vld [vmem:[#allocation7 + $0x28] sm:$0xff]
    %v250 = vld [vmem:[#allocation7 + $0x30] sm:$0xff]
    %v251 = vld [vmem:[#allocation7 + $0x38] sm:$0xff]
    %v252 = vld [vmem:[#allocation7 + $0x40] sm:$0xff]
    %v253 = vld [vmem:[#allocation7 + $0x48] sm:$0xff]
    %v254 = vld [vmem:[#allocation7 + $0x50] sm:$0xff]
    %v255 = vld [vmem:[#allocation7 + $0x58] sm:$0xff]
    %v256 = vld [vmem:[#allocation7 + $0x60] sm:$0xff]
    %v257 = vld [vmem:[#allocation7 + $0x68] sm:$0xff]
    %v258 = vld [vmem:[#allocation7 + $0x70] sm:$0xff]
    %v259 = vld [vmem:[#allocation7 + $0x78] sm:$0xff]
    %v260 = vld [vmem:[#allocation7 + $0x80] sm:$0xff]
    %v261 = vld [vmem:[#allocation7 + $0x88] sm:$0xff]
    %v262 = vld [vmem:[#allocation7 + $0x90] sm:$0xff]
    %v263 = vld [vmem:[#allocation7 + $0x98] sm:$0xff]
    %v264 = vld [vmem:[#allocation7 + $0xa0] sm:$0xff]
    %v265 = vld [vmem:[#allocation7 + $0xa8] sm:$0xff]
    %v266 = vld [vmem:[#allocation7 + $0xb0] sm:$0xff]
    %v267 = vld [vmem:[#allocation7 + $0xb8] sm:$0xff]
    %v268 = vld [vmem:[#allocation7 + $0xc0] sm:$0xff]
    %v269 = vld [vmem:[#allocation7 + $0xc8] sm:$0xff]
    %v270 = vld [vmem:[#allocation7 + $0xd0] sm:$0xff]
    %v271 = vld [vmem:[#allocation7 + $0xd8] sm:$0xff]
    %v272 = vld [vmem:[#allocation7 + $0xe0] sm:$0xff]
    %v273 = vld [vmem:[#allocation7 + $0xe8] sm:$0xff]
    %v274 = vld [vmem:[#allocation7 + $0xf0] sm:$0xff]
    %v275 = vld [vmem:[#allocation7 + $0xf8] sm:$0xff]
    %v276 = vlaneseq
    %v277 = vshrl.u32 %v276, 7
    %v278 = vsub.s32 3, %v277
    %v279 = vrot.slane %v86, %v278
    %v280 = vlaneseq
    %v281 = vshrl.u32 %v280, 7
    %v282 = vsub.s32 3, %v281
    %v283 = vrot.slane %v87, %v282
    %v316 = vunpack.c.l.b16 %v244
    %v317 = vunpack.c.h.b16 %v244
    %v318 = vunpack.c.l.b16 %v245
    %v319 = vunpack.c.h.b16 %v245
    %v320 = vunpack.c.l.b16 %v246
    %v321 = vunpack.c.h.b16 %v246
    %v322 = vunpack.c.l.b16 %v247
    %v323 = vunpack.c.h.b16 %v247
    %v324 = vunpack.c.l.b16 %v248
    %v325 = vunpack.c.h.b16 %v248
    %v326 = vunpack.c.l.b16 %v249
    %v327 = vunpack.c.h.b16 %v249
    %v328 = vunpack.c.l.b16 %v250
    %v329 = vunpack.c.h.b16 %v250
    %v330 = vunpack.c.l.b16 %v251
    %v331 = vunpack.c.h.b16 %v251
    %v332 = vunpack.c.l.b16 %v252
    %v333 = vunpack.c.h.b16 %v252
    %v334 = vunpack.c.l.b16 %v253
    %v335 = vunpack.c.h.b16 %v253
    %v336 = vunpack.c.l.b16 %v254
    %v337 = vunpack.c.h.b16 %v254
    %v338 = vunpack.c.l.b16 %v255
    %v339 = vunpack.c.h.b16 %v255
    %v340 = vunpack.c.l.b16 %v256
    %v341 = vunpack.c.h.b16 %v256
    %v342 = vunpack.c.l.b16 %v257
    %v343 = vunpack.c.h.b16 %v257
    %v344 = vunpack.c.l.b16 %v258
    %v345 = vunpack.c.h.b16 %v258
    %v346 = vunpack.c.l.b16 %v259
    %v347 = vunpack.c.h.b16 %v259
    %v348 = vunpack.c.l.b16 %v260
    %v349 = vunpack.c.h.b16 %v260
    %v350 = vunpack.c.l.b16 %v261
    %v351 = vunpack.c.h.b16 %v261
    %v352 = vunpack.c.l.b16 %v262
    %v353 = vunpack.c.h.b16 %v262
    %v354 = vunpack.c.l.b16 %v263
    %v355 = vunpack.c.h.b16 %v263
    %v356 = vunpack.c.l.b16 %v264
    %v357 = vunpack.c.h.b16 %v264
    %v358 = vunpack.c.l.b16 %v265
    %v359 = vunpack.c.h.b16 %v265
    %v360 = vunpack.c.l.b16 %v266
    %v361 = vunpack.c.h.b16 %v266
    %v362 = vunpack.c.l.b16 %v267
    %v363 = vunpack.c.h.b16 %v267
    %v364 = vunpack.c.l.b16 %v268
    %v365 = vunpack.c.h.b16 %v268
    %v366 = vunpack.c.l.b16 %v269
    %v367 = vunpack.c.h.b16 %v269
    %v368 = vunpack.c.l.b16 %v270
    %v369 = vunpack.c.h.b16 %v270
    %v370 = vunpack.c.l.b16 %v271
    %v371 = vunpack.c.h.b16 %v271
    %v372 = vunpack.c.l.b16 %v272
    %v373 = vunpack.c.h.b16 %v272
    %v374 = vunpack.c.l.b16 %v273
    %v375 = vunpack.c.h.b16 %v273
    %v376 = vunpack.c.l.b16 %v274
    %v377 = vunpack.c.h.b16 %v274
    %v378 = vunpack.c.l.b16 %v275
    %v379 = vunpack.c.h.b16 %v275
    %v380 = vpack.c.b16 %v318, %v316
    %v381 = vpack.c.b16 %v319, %v317
    %v382 = vpack.c.b16 %v322, %v320
    %v383 = vpack.c.b16 %v323, %v321
    %v384 = vpack.c.b16 %v326, %v324
    %v385 = vpack.c.b16 %v327, %v325
    %v386 = vpack.c.b16 %v330, %v328
    %v387 = vpack.c.b16 %v331, %v329
    %v388 = vpack.c.b16 %v334, %v332
    %v389 = vpack.c.b16 %v335, %v333
    %v390 = vpack.c.b16 %v338, %v336
    %v391 = vpack.c.b16 %v339, %v337
    %v392 = vpack.c.b16 %v342, %v340
    %v393 = vpack.c.b16 %v343, %v341
    %v394 = vpack.c.b16 %v346, %v344
    %v395 = vpack.c.b16 %v347, %v345
    %v396 = vpack.c.b16 %v350, %v348
    %v397 = vpack.c.b16 %v351, %v349
    %v398 = vpack.c.b16 %v354, %v352
    %v399 = vpack.c.b16 %v355, %v353
    %v400 = vpack.c.b16 %v358, %v356
    %v401 = vpack.c.b16 %v359, %v357
    %v402 = vpack.c.b16 %v362, %v360
    %v403 = vpack.c.b16 %v363, %v361
    %v404 = vpack.c.b16 %v366, %v364
    %v405 = vpack.c.b16 %v367, %v365
    %v406 = vpack.c.b16 %v370, %v368
    %v407 = vpack.c.b16 %v371, %v369
    %v408 = vpack.c.b16 %v374, %v372
    %v409 = vpack.c.b16 %v375, %v373
    %v410 = vpack.c.b16 %v378, %v376
    %v411 = vpack.c.b16 %v379, %v377
    %444 = vmatprep.subr.bf16.mxu0 %v395
    %445 = vmatpush1.bf16.msra.mxu0 %v394
    %446 = vmatprep.subr.bf16.mxu0 %v393
    %447 = vmatpush1.bf16.msra.mxu0 %v392
    %448 = vmatprep.subr.bf16.mxu0 %v391
    %449 = vmatpush1.bf16.msra.mxu0 %v390
    %450 = vmatprep.subr.bf16.mxu0 %v389
    %451 = vmatpush1.bf16.msra.mxu0 %v388
    %452 = vmatprep.subr.bf16.mxu0 %v387
    %453 = vmatpush1.bf16.msra.mxu0 %v386
    %454 = vmatprep.subr.bf16.mxu0 %v385
    %455 = vmatpush1.bf16.msra.mxu0 %v384
    %456 = vmatprep.subr.bf16.mxu0 %v383
    %457 = vmatpush1.bf16.msra.mxu0 %v382
    %458 = vmatprep.subr.bf16.mxu0 %v381
    %459 = vmatpush1.bf16.msra.mxu0 %v380
    %460 = vmatprep.subr.bf16.mxu0 %v411
    %461 = vmatpush2.bf16.msra.mxu0 %v410
    %462 = vmatprep.subr.bf16.mxu0 %v409
    %463 = vmatpush2.bf16.msra.mxu0 %v408
    %464 = vmatprep.subr.bf16.mxu0 %v407
    %465 = vmatpush2.bf16.msra.mxu0 %v406
    %466 = vmatprep.subr.bf16.mxu0 %v405
    %467 = vmatpush2.bf16.msra.mxu0 %v404
    %468 = vmatprep.subr.bf16.mxu0 %v403
    %469 = vmatpush2.bf16.msra.mxu0 %v402
    %470 = vmatprep.subr.bf16.mxu0 %v401
    %471 = vmatpush2.bf16.msra.mxu0 %v400
    %472 = vmatprep.subr.bf16.mxu0 %v399
    %473 = vmatpush2.bf16.msra.mxu0 %v398
    %474 = vmatprep.subr.bf16.mxu0 %v397
    %475 = vmatpush2.bf16.msra.mxu0 %v396
    %476 = vmatprep.mubr.bf16.mxu0 %v243
    %477 = vmatmul.mubr.bf16.gmra.mxu0 %v242
    %v478 = vpop.f32.mrf.mxu0
    %v479 = vadd.f32 %v279, %v478
    %v480 = vpop.f32.mrf.mxu0
    %v481 = vadd.f32 %v283, %v480
    %v482 = vpop.f32.mrf.mxu0
    %v483 = vpop.f32.mrf.mxu0
    %484 = vdwg.mxu0
    %v485 = vrot.slane %v479, 4
    %v486 = vadd.f32 %v479, %v485
    %v487 = vrot.slane %v486, 2
    %v488 = vadd.f32 %v486, %v487
    %v489 = vrot.slane %v488, 1
    %v490 = vadd.f32 %v488, %v489
    %v491 = vrot.slane %v481, 4
    %v492 = vadd.f32 %v481, %v491
    %v493 = vrot.slane %v492, 2
    %v494 = vadd.f32 %v492, %v493
    %v495 = vrot.slane %v494, 1
    %v496 = vadd.f32 %v494, %v495
    %v497 = vmul.f32 %v490, %v179
    %v498 = vmul.f32 %v496, %v179
    %v499 = vsub.f32 %v479, %v497
    %v500 = vsub.f32 %v481, %v498
    %v501 = vmul.f32 %v499, %v499
    %v502 = vmul.f32 %v500, %v500
    %v503 = vrot.slane %v501, 4
    %v504 = vadd.f32 %v501, %v503
    %v505 = vrot.slane %v504, 2
    %v506 = vadd.f32 %v504, %v505
    %v507 = vrot.slane %v506, 1
    %v508 = vadd.f32 %v506, %v507
    %v509 = vrot.slane %v502, 4
    %v510 = vadd.f32 %v502, %v509
    %v511 = vrot.slane %v510, 2
    %v512 = vadd.f32 %v510, %v511
    %v513 = vrot.slane %v512, 1
    %v514 = vadd.f32 %v512, %v513
    %v515 = vmul.f32 %v508, %v179
    %v516 = vmul.f32 %v514, %v179
    %v517 = vadd.f32 %v515, 1e-05
    %v518 = vadd.f32 %v516, 1e-05
    %v519 = vrsqrt.pop %v517
    %v520 = vrsqrt.pop %v518
    %v521 = vmul.f32 %v86, %v519
    %v522 = vmul.f32 %v87, %v520
    %v523 = vmul.f32 %v497, %v521
    %v524 = vmul.f32 %v498, %v522
    %v527 = vrot.slane %v523, 7
    %v528 = vrot.slane %v524, 7
    %v531 = vsub.f32 %v86, %v527
    %v532 = vsub.f32 %v87, %v528
    %v533 = vlaneseq
    %v534 = vshrl.u32 %v533, 7
    %v535 = vsub.s32 4, %v534
    %v536 = vrot.slane %v521, %v535
    %v537 = vlaneseq
    %v538 = vshrl.u32 %v537, 7
    %v539 = vsub.s32 4, %v538
    %v540 = vrot.slane %v522, %v539
    %v541 = vmul.f32 %v479, %v536
    %v542 = vmul.f32 %v481, %v540
    %v543 = vlaneseq
    %v544 = vshrl.u32 %v543, 7
    %v545 = vsub.s32 5, %v544
    %v546 = vrot.slane %v531, %v545
    %v547 = vlaneseq
    %v548 = vshrl.u32 %v547, 7
    %v549 = vsub.s32 5, %v548
    %v550 = vrot.slane %v532, %v549
    %v551 = vadd.f32 %v541, %v546
    %v552 = vadd.f32 %v542, %v550
    %vm553 = vcmp.gt.f32.partialorder %v551, 0.0
    %vm554 = vcmp.gt.f32.partialorder %v552, 0.0
    %v555 = vmul.f32 %v551, 0.2
    %v556 = vmul.f32 %v552, 0.2
    %v557 = vsel %vm553, %v551, %v555
    %v558 = vsel %vm554, %v552, %v556
    %v559 = vpack.c.bf16 %v557, %v557
    %v560 = vpack.c.bf16 %v558, %v558
    %v561 = vld [vmem:[#allocation8] sm:$0xf]
    %v562 = vld [vmem:[#allocation8 + $0x4] sm:$0xf]
    %v563 = vld [vmem:[#allocation8 + $0x8] sm:$0xf]
    %v564 = vld [vmem:[#allocation8 + $0xc] sm:$0xf]
    %v565 = vld [vmem:[#allocation8 + $0x10] sm:$0xf]
    %v566 = vld [vmem:[#allocation8 + $0x14] sm:$0xf]
    %v567 = vld [vmem:[#allocation8 + $0x18] sm:$0xf]
    %v568 = vld [vmem:[#allocation8 + $0x1c] sm:$0xf]
    %v569 = vld [vmem:[#allocation8 + $0x20] sm:$0xf]
    %v570 = vld [vmem:[#allocation8 + $0x24] sm:$0xf]
    %v571 = vld [vmem:[#allocation8 + $0x28] sm:$0xf]
    %v572 = vld [vmem:[#allocation8 + $0x2c] sm:$0xf]
    %v573 = vld [vmem:[#allocation8 + $0x30] sm:$0xf]
    %v574 = vld [vmem:[#allocation8 + $0x34] sm:$0xf]
    %v575 = vld [vmem:[#allocation8 + $0x38] sm:$0xf]
    %v576 = vld [vmem:[#allocation8 + $0x3c] sm:$0xf]
    %v577 = vld [vmem:[#allocation8 + $0x40] sm:$0xf]
    %v578 = vld [vmem:[#allocation8 + $0x44] sm:$0xf]
    %v579 = vld [vmem:[#allocation8 + $0x48] sm:$0xf]
    %v580 = vld [vmem:[#allocation8 + $0x4c] sm:$0xf]
    %v581 = vld [vmem:[#allocation8 + $0x50] sm:$0xf]
    %v582 = vld [vmem:[#allocation8 + $0x54] sm:$0xf]
    %v583 = vld [vmem:[#allocation8 + $0x58] sm:$0xf]
    %v584 = vld [vmem:[#allocation8 + $0x5c] sm:$0xf]
    %v585 = vld [vmem:[#allocation8 + $0x60] sm:$0xf]
    %v586 = vld [vmem:[#allocation8 + $0x64] sm:$0xf]
    %v587 = vld [vmem:[#allocation8 + $0x68] sm:$0xf]
    %v588 = vld [vmem:[#allocation8 + $0x6c] sm:$0xf]
    %v589 = vld [vmem:[#allocation8 + $0x70] sm:$0xf]
    %v590 = vld [vmem:[#allocation8 + $0x74] sm:$0xf]
    %v591 = vld [vmem:[#allocation8 + $0x78] sm:$0xf]
    %v592 = vld [vmem:[#allocation8 + $0x7c] sm:$0xf]
    %v593 = vlaneseq
    %v594 = vshrl.u32 %v593, 7
    %v595 = vsub.s32 6, %v594
    %v596 = vrot.slane %v86, %v595
    %v629 = vunpack.c.l.b16 %v561
    %v630 = vunpack.c.l.b16 %v562
    %v631 = vunpack.c.l.b16 %v563
    %v632 = vunpack.c.l.b16 %v564
    %v633 = vunpack.c.l.b16 %v565
    %v634 = vunpack.c.l.b16 %v566
    %v635 = vunpack.c.l.b16 %v567
    %v636 = vunpack.c.l.b16 %v568
    %v637 = vunpack.c.l.b16 %v569
    %v638 = vunpack.c.l.b16 %v570
    %v639 = vunpack.c.l.b16 %v571
    %v640 = vunpack.c.l.b16 %v572
    %v641 = vunpack.c.l.b16 %v573
    %v642 = vunpack.c.l.b16 %v574
    %v643 = vunpack.c.l.b16 %v575
    %v644 = vunpack.c.l.b16 %v576
    %v645 = vunpack.c.l.b16 %v577
    %v646 = vunpack.c.l.b16 %v578
    %v647 = vunpack.c.l.b16 %v579
    %v648 = vunpack.c.l.b16 %v580
    %v649 = vunpack.c.l.b16 %v581
    %v650 = vunpack.c.l.b16 %v582
    %v651 = vunpack.c.l.b16 %v583
    %v652 = vunpack.c.l.b16 %v584
    %v653 = vunpack.c.l.b16 %v585
    %v654 = vunpack.c.l.b16 %v586
    %v655 = vunpack.c.l.b16 %v587
    %v656 = vunpack.c.l.b16 %v588
    %v657 = vunpack.c.l.b16 %v589
    %v658 = vunpack.c.l.b16 %v590
    %v659 = vunpack.c.l.b16 %v591
    %v660 = vunpack.c.l.b16 %v592
    %v661 = vpack.c.b16 %v630, %v629
    %v662 = vpack.c.b16 %v632, %v631
    %v663 = vpack.c.b16 %v634, %v633
    %v664 = vpack.c.b16 %v636, %v635
    %v665 = vpack.c.b16 %v638, %v637
    %v666 = vpack.c.b16 %v640, %v639
    %v667 = vpack.c.b16 %v642, %v641
    %v668 = vpack.c.b16 %v644, %v643
    %v669 = vpack.c.b16 %v646, %v645
    %v670 = vpack.c.b16 %v648, %v647
    %v671 = vpack.c.b16 %v650, %v649
    %v672 = vpack.c.b16 %v652, %v651
    %v673 = vpack.c.b16 %v654, %v653
    %v674 = vpack.c.b16 %v656, %v655
    %v675 = vpack.c.b16 %v658, %v657
    %v676 = vpack.c.b16 %v660, %v659
    %693 = vmatprep.subr.bf16.mxu0 0
    %694 = vmatpush1.bf16.msra.mxu0 %v668
    %695 = vmatprep.subr.bf16.mxu0 0
    %696 = vmatpush1.bf16.msra.mxu0 %v667
    %697 = vmatprep.subr.bf16.mxu0 0
    %698 = vmatpush1.bf16.msra.mxu0 %v666
    %699 = vmatprep.subr.bf16.mxu0 0
    %700 = vmatpush1.bf16.msra.mxu0 %v665
    %701 = vmatprep.subr.bf16.mxu0 0
    %702 = vmatpush1.bf16.msra.mxu0 %v664
    %703 = vmatprep.subr.bf16.mxu0 0
    %704 = vmatpush1.bf16.msra.mxu0 %v663
    %705 = vmatprep.subr.bf16.mxu0 0
    %706 = vmatpush1.bf16.msra.mxu0 %v662
    %707 = vmatprep.subr.bf16.mxu0 0
    %708 = vmatpush1.bf16.msra.mxu0 %v661
    %709 = vmatprep.subr.bf16.mxu0 0
    %710 = vmatpush2.bf16.msra.mxu0 %v676
    %711 = vmatprep.subr.bf16.mxu0 0
    %712 = vmatpush2.bf16.msra.mxu0 %v675
    %713 = vmatprep.subr.bf16.mxu0 0
    %714 = vmatpush2.bf16.msra.mxu0 %v674
    %715 = vmatprep.subr.bf16.mxu0 0
    %716 = vmatpush2.bf16.msra.mxu0 %v673
    %717 = vmatprep.subr.bf16.mxu0 0
    %718 = vmatpush2.bf16.msra.mxu0 %v672
    %719 = vmatprep.subr.bf16.mxu0 0
    %720 = vmatpush2.bf16.msra.mxu0 %v671
    %721 = vmatprep.subr.bf16.mxu0 0
    %722 = vmatpush2.bf16.msra.mxu0 %v670
    %723 = vmatprep.subr.bf16.mxu0 0
    %724 = vmatpush2.bf16.msra.mxu0 %v669
    %725 = vmatprep.mubr.bf16.mxu0 %v560
    %726 = vmatmul.mubr.bf16.gmra.mxu0 %v559
    %v727 = vpop.f32.mrf.mxu0
    %v728 = vadd.f32 %v596, %v727
    %v729 = vpop.f32.mrf.mxu0
    %v730 = vpop.f32.mrf.mxu0
    %v731 = vpop.f32.mrf.mxu0
    %732 = vdwg.mxu0
    %733 = vst [vmem:[#allocation11] sm:$0xff] %v728
    // Predicated region
    $region42: #{tpu_custom_call.1} parent=1 // pred_check
      _
    $region43: #{tpu_custom_call.1} parent=1 // pred_check_branch
      %735 = sbr.rel (0) target = $region45
    $region44: #{tpu_custom_call.1} parent=1 // pred_region
      %s737 = ssub.s32 128, 128
      %738 = vsyncadd [#allocation4], %s737
      %s740 = sshll.u32 [#allocation11], 4
      %s741 = int_to_ptr.vmem [resolvable:$true] %s740
      %743 = dma.vmem_to_hbm [thread:$0]  %s741, 128, %s5, [#allocation4]
    $region45: #{tpu_custom_call.1} parent=1 // pred_fallthru
      _
    // Predicated region
    $region46: #{tpu_custom_call.1} parent=1 // pred_check
      _
    $region47: #{tpu_custom_call.1} parent=1 // pred_check_branch
      %745 = sbr.rel (0) target = $region49
    $region48: #{tpu_custom_call.1} parent=1 // pred_region
      %746 = dma.done [#allocation4], 128
    $region49: #{tpu_custom_call.1} parent=1 // pred_fallthru
      _
    %747 = vsyncpa [#allocation3], 1
    %748 = vsyncpa [#allocation6], 1
    %749 = vsyncpa [#allocation9], 1
    %750 = vsyncpa [#allocation4], 1

</llo_original>
